<compile_context>
chip_gen: v7x
topology: tpu7x:2x2x1
jax: 0.10.0
libtpu: 0.0.40
codegen_flags: <defaults>
</compile_context>

<pallas_src>
import math

import jax
import jax.numpy as jnp
from jax.experimental import pallas as pl
from jax.experimental.pallas import tpu as pltpu


def timestep_embedder_kernel(t_ref, freqs_ref, w1c_ref, w1s_ref, b1_ref,
                             w2t_ref, b2_ref, o_ref):
    # t_ref    : (TN, 1)    f32  timesteps for this tile
    # freqs_ref: (1, half)  f32  exp(-log(max_period) * arange(half) / half)
    # w1c_ref  : (half, H)  bf16 cos-half of W1^T
    # w1s_ref  : (half, H)  bf16 sin-half of W1^T
    # b1_ref   : (1, H)     f32
    # w2t_ref  : (H, H)     bf16 W2^T
    # b2_ref   : (1, H)     f32
    # o_ref    : (TN, H)

    # --- timestep_embedding: args = t[:, None] * freqs[None, :] ---
    args = t_ref[...] * freqs_ref[...]          # (TN, half), VPU broadcast
    cos_e = jnp.cos(args)                       # EUP
    sin_e = jnp.sin(args)

    # --- mlp[0]: Linear(F, H) with cat([cos, sin]) folded into two MXU matmuls,
    #     bf16 operands, f32 accumulation ---
    h = jnp.dot(cos_e.astype(jnp.bfloat16), w1c_ref[...],
                preferred_element_type=jnp.float32)
    h = h + jnp.dot(sin_e.astype(jnp.bfloat16), w1s_ref[...],
                    preferred_element_type=jnp.float32)
    h = h + b1_ref[...]

    # --- mlp[1]: SiLU(x) = x * sigmoid(x), kept in f32 ---
    h = h * (1.0 / (1.0 + jnp.exp(-h)))

    # --- mlp[2]: Linear(H, H) ---
    out = jnp.dot(h.astype(jnp.bfloat16), w2t_ref[...],
                  preferred_element_type=jnp.float32) + b2_ref[...]
    o_ref[...] = out.astype(o_ref.dtype)


def timestep_embedder_forward(t, w1, b1, w2, b2, *,
                              frequency_embedding_size=256,
                              max_period=10000,
                              block_n=8):
    """Fused TimestepEmbedder forward. t: (N,) f32. Returns (N, H) f32."""
    N = t.shape[0]
    F = frequency_embedding_size
    H = w1.shape[0]
    assert w1.shape == (H, F) and w2.shape == (H, H)
    assert b1.shape == (H,) and b2.shape == (H,)
    assert F % 2 == 0
    # TODO(synk): the `dim % 2` zero-pad branch of timestep_embedding is not
    # implemented in-kernel (the default frequency_embedding_size=256 is even).
    half = F // 2

    # Host-side layout plumbing (done once, outside the kernel):
    freqs = jnp.exp(
        -math.log(max_period) * jnp.arange(half, dtype=jnp.float32) / half
    ).reshape(1, half)
    w1t = jnp.transpose(w1).astype(jnp.bfloat16)        # (F, H)
    w1c = w1t[:half]                                    # (half, H) cos-half
    w1s = w1t[half:]                                    # (half, H) sin-half
    w2t = jnp.transpose(w2).astype(jnp.bfloat16)        # (H, H)
    b1r = b1.reshape(1, H).astype(jnp.float32)
    b2r = b2.reshape(1, H).astype(jnp.float32)

    tn = block_n
    n_pad = (-N) % tn
    t2 = t.astype(jnp.float32).reshape(N, 1)
    if n_pad:
        t2 = jnp.concatenate([t2, jnp.zeros((n_pad, 1), jnp.float32)], axis=0)
    n_total = N + n_pad

    grid_spec = pltpu.PrefetchScalarGridSpec(
        num_scalar_prefetch=0,
        grid=(n_total // tn,),
        in_specs=[
            pl.BlockSpec((tn, 1), lambda i: (i, 0)),      # t (per-tile)
            pl.BlockSpec((1, half), lambda i: (0, 0)),    # freqs (constant)
            pl.BlockSpec((half, H), lambda i: (0, 0)),    # W1^T cos-half
            pl.BlockSpec((half, H), lambda i: (0, 0)),    # W1^T sin-half
            pl.BlockSpec((1, H), lambda i: (0, 0)),       # b1
            pl.BlockSpec((H, H), lambda i: (0, 0)),       # W2^T
            pl.BlockSpec((1, H), lambda i: (0, 0)),       # b2
        ],
        out_specs=pl.BlockSpec((tn, H), lambda i: (i, 0)),
    )
    out = pl.pallas_call(
        timestep_embedder_kernel,
        out_shape=jax.ShapeDtypeStruct((n_total, H), jnp.float32),
        grid_spec=grid_spec,
        compiler_params=pltpu.CompilerParams(
            dimension_semantics=("parallel",)),
    )(t2, freqs, w1c, w1s, b1r, w2t, b2r)
    return out[:N]


def reference_forward(t, w1, b1, w2, b2, *, dim=256, max_period=10000):
    """Pure-JAX f32 replica of TimestepEmbedder.forward (torch semantics)."""
    half = dim // 2
    freqs = jnp.exp(-math.log(max_period)
                    * jnp.arange(half, dtype=jnp.float32) / half)
    args = t[:, None].astype(jnp.float32) * freqs[None]
    emb = jnp.concatenate([jnp.cos(args), jnp.sin(args)], axis=-1)
    h = emb @ w1.T + b1[None]
    h = h * jax.nn.sigmoid(h)                    # SiLU
    return h @ w2.T + b2[None]


if __name__ == "__main__":
    N, F, H = 16, 256, 128
    key = jax.random.PRNGKey(0)
    ks = jax.random.split(key, 5)

    # Diffusion-style fractional timesteps.
    t = jax.random.uniform(ks[0], (N,), jnp.float32, minval=0.0, maxval=1000.0)
    # torch nn.Linear default init: U(-1/sqrt(fan_in), 1/sqrt(fan_in)).
    w1 = jax.random.uniform(ks[1], (H, F), jnp.float32, -1.0, 1.0) / math.sqrt(F)
    b1 = jax.random.uniform(ks[2], (H,), jnp.float32, -1.0, 1.0) / math.sqrt(F)
    w2 = jax.random.uniform(ks[3], (H, H), jnp.float32, -1.0, 1.0) / math.sqrt(H)
    b2 = jax.random.uniform(ks[4], (H,), jnp.float32, -1.0, 1.0) / math.sqrt(H)

    out = jax.block_until_ready(
        timestep_embedder_forward(t, w1, b1, w2, b2,
                                  frequency_embedding_size=F))
    assert out.shape == (N, H) and out.dtype == jnp.float32

    ref = jax.block_until_ready(reference_forward(t, w1, b1, w2, b2, dim=F))
    # Tolerance accounts for bf16 MXU operands (f32 accumulation); estimated
    # worst-case quantization error is ~1e-2 at these magnitudes.
    max_err = float(jnp.max(jnp.abs(out - ref)))
    assert max_err < 3e-2, f"kernel mismatch vs f32 reference: max_err={max_err}"

    print("KERNEL_OK")
</pallas_src>

<mosaic_0001>
module attributes {stable_mosaic.version = 11 : i64} {
  func.func @timestep_embedder_kernel(%arg0: i32, %arg1: memref<8x1xf32, #tpu.memory_space<vmem>>, %arg2: memref<1x128xf32, #tpu.memory_space<vmem>>, %arg3: memref<128x128xbf16, #tpu.memory_space<vmem>>, %arg4: memref<128x128xbf16, #tpu.memory_space<vmem>>, %arg5: memref<1x128xf32, #tpu.memory_space<vmem>>, %arg6: memref<128x128xbf16, #tpu.memory_space<vmem>>, %arg7: memref<1x128xf32, #tpu.memory_space<vmem>>, %arg8: memref<8x128xf32, #tpu.memory_space<vmem>>) attributes {dimension_semantics = [#tpu.dimension_semantics<parallel>], iteration_bounds = array<i64: 2>, scalar_prefetch = 0 : i64, scratch_operands = 0 : i64, tpu.core_type = #tpu.core_type<tc>, window_params = [{transform_indices = @transform_0, window_bounds = array<i64: 8, 1>}, {pipeline_mode = #tpu.pipeline_mode<synchronous>, transform_indices = @transform_1, window_bounds = array<i64: 1, 128>}, {pipeline_mode = #tpu.pipeline_mode<synchronous>, transform_indices = @transform_2, window_bounds = array<i64: 128, 128>}, {pipeline_mode = #tpu.pipeline_mode<synchronous>, transform_indices = @transform_3, window_bounds = array<i64: 128, 128>}, {pipeline_mode = #tpu.pipeline_mode<synchronous>, transform_indices = @transform_4, window_bounds = array<i64: 1, 128>}, {pipeline_mode = #tpu.pipeline_mode<synchronous>, transform_indices = @transform_5, window_bounds = array<i64: 128, 128>}, {pipeline_mode = #tpu.pipeline_mode<synchronous>, transform_indices = @transform_6, window_bounds = array<i64: 1, 128>}, {transform_indices = @transform_7, window_bounds = array<i64: 8, 128>}]} {
    %c0 = arith.constant 0 : index
    %c0_0 = arith.constant 0 : index
    %0 = vector.load %arg1[%c0, %c0_0] : memref<8x1xf32, #tpu.memory_space<vmem>>, vector<8x1xf32>
    %c0_1 = arith.constant 0 : index
    %c0_2 = arith.constant 0 : index
    %1 = vector.load %arg2[%c0_1, %c0_2] : memref<1x128xf32, #tpu.memory_space<vmem>>, vector<1x128xf32>
    %2 = vector.broadcast %0 : vector<8x1xf32> to vector<8x128xf32>
    %3 = vector.broadcast %1 : vector<1x128xf32> to vector<8x128xf32>
    %4 = arith.mulf %2, %3 : vector<8x128xf32>
    %5 = math.cos %4 : vector<8x128xf32>
    %6 = math.sin %4 : vector<8x128xf32>
    %7 = arith.truncf %5 : vector<8x128xf32> to vector<8x128xbf16>
    %c0_3 = arith.constant 0 : index
    %c0_4 = arith.constant 0 : index
    %8 = vector.load %arg3[%c0_3, %c0_4] : memref<128x128xbf16, #tpu.memory_space<vmem>>, vector<128x128xbf16>
    %cst = arith.constant dense<0.000000e+00> : vector<8x128xf32>
    %9 = tpu.matmul %7, %8, %cst {dimension_numbers = #tpu.dot_dimension_numbers<[1], [0], [0], [1], [0, 0, 1, 1], [], []>} : vector<8x128xbf16>, vector<128x128xbf16>, vector<8x128xf32> -> vector<8x128xf32>
    %10 = arith.truncf %6 : vector<8x128xf32> to vector<8x128xbf16>
    %c0_5 = arith.constant 0 : index
    %c0_6 = arith.constant 0 : index
    %11 = vector.load %arg4[%c0_5, %c0_6] : memref<128x128xbf16, #tpu.memory_space<vmem>>, vector<128x128xbf16>
    %cst_7 = arith.constant dense<0.000000e+00> : vector<8x128xf32>
    %12 = tpu.matmul %10, %11, %cst_7 {dimension_numbers = #tpu.dot_dimension_numbers<[1], [0], [0], [1], [0, 0, 1, 1], [], []>} : vector<8x128xbf16>, vector<128x128xbf16>, vector<8x128xf32> -> vector<8x128xf32>
    %13 = arith.addf %9, %12 : vector<8x128xf32>
    %c0_8 = arith.constant 0 : index
    %c0_9 = arith.constant 0 : index
    %14 = vector.load %arg5[%c0_8, %c0_9] : memref<1x128xf32, #tpu.memory_space<vmem>>, vector<1x128xf32>
    %15 = vector.broadcast %14 : vector<1x128xf32> to vector<8x128xf32>
    %16 = arith.addf %13, %15 : vector<8x128xf32>
    %cst_10 = arith.constant 0.000000e+00 : f32
    %17 = vector.broadcast %cst_10 : f32 to vector<8x128xf32>
    %18 = arith.subf %17, %16 : vector<8x128xf32>
    %19 = math.exp %18 : vector<8x128xf32>
    %cst_11 = arith.constant 1.000000e+00 : f32
    %20 = vector.broadcast %cst_11 : f32 to vector<8x128xf32>
    %21 = arith.addf %20, %19 : vector<8x128xf32>
    %cst_12 = arith.constant 1.000000e+00 : f32
    %22 = vector.broadcast %cst_12 : f32 to vector<8x128xf32>
    %23 = arith.divf %22, %21 : vector<8x128xf32>
    %24 = arith.mulf %16, %23 : vector<8x128xf32>
    %25 = arith.truncf %24 : vector<8x128xf32> to vector<8x128xbf16>
    %c0_13 = arith.constant 0 : index
    %c0_14 = arith.constant 0 : index
    %26 = vector.load %arg6[%c0_13, %c0_14] : memref<128x128xbf16, #tpu.memory_space<vmem>>, vector<128x128xbf16>
    %cst_15 = arith.constant dense<0.000000e+00> : vector<8x128xf32>
    %27 = tpu.matmul %25, %26, %cst_15 {dimension_numbers = #tpu.dot_dimension_numbers<[1], [0], [0], [1], [0, 0, 1, 1], [], []>} : vector<8x128xbf16>, vector<128x128xbf16>, vector<8x128xf32> -> vector<8x128xf32>
    %c0_16 = arith.constant 0 : index
    %c0_17 = arith.constant 0 : index
    %28 = vector.load %arg7[%c0_16, %c0_17] : memref<1x128xf32, #tpu.memory_space<vmem>>, vector<1x128xf32>
    %29 = vector.broadcast %28 : vector<1x128xf32> to vector<8x128xf32>
    %30 = arith.addf %27, %29 : vector<8x128xf32>
    %c0_18 = arith.constant 0 : index
    %c0_19 = arith.constant 0 : index
    %31 = vector.load %arg8[%c0_18, %c0_19] : memref<8x128xf32, #tpu.memory_space<vmem>>, vector<8x128xf32>
    tpu.vector_store %arg8[%c0_18, %c0_19], %30 {strides = array<i32>} : memref<8x128xf32, #tpu.memory_space<vmem>>, vector<8x128xf32>,
    return
  }
  func.func @transform_0(%arg0: i32) -> (i32, i32) {
    %c0_i32 = arith.constant 0 : i32
    %c0_i32_0 = arith.constant 0 : i32
    return %arg0, %c0_i32 : i32, i32
  }
  func.func @transform_1(%arg0: i32) -> (i32, i32) {
    %c0_i32 = arith.constant 0 : i32
    %c0_i32_0 = arith.constant 0 : i32
    %c0_i32_1 = arith.constant 0 : i32
    return %c0_i32, %c0_i32_0 : i32, i32
  }
  func.func @transform_2(%arg0: i32) -> (i32, i32) {
    %c0_i32 = arith.constant 0 : i32
    %c0_i32_0 = arith.constant 0 : i32
    %c0_i32_1 = arith.constant 0 : i32
    return %c0_i32, %c0_i32_0 : i32, i32
  }
  func.func @transform_3(%arg0: i32) -> (i32, i32) {
    %c0_i32 = arith.constant 0 : i32
    %c0_i32_0 = arith.constant 0 : i32
    %c0_i32_1 = arith.constant 0 : i32
    return %c0_i32, %c0_i32_0 : i32, i32
  }
  func.func @transform_4(%arg0: i32) -> (i32, i32) {
    %c0_i32 = arith.constant 0 : i32
    %c0_i32_0 = arith.constant 0 : i32
    %c0_i32_1 = arith.constant 0 : i32
    return %c0_i32, %c0_i32_0 : i32, i32
  }
  func.func @transform_5(%arg0: i32) -> (i32, i32) {
    %c0_i32 = arith.constant 0 : i32
    %c0_i32_0 = arith.constant 0 : i32
    %c0_i32_1 = arith.constant 0 : i32
    return %c0_i32, %c0_i32_0 : i32, i32
  }
  func.func @transform_6(%arg0: i32) -> (i32, i32) {
    %c0_i32 = arith.constant 0 : i32
    %c0_i32_0 = arith.constant 0 : i32
    %c0_i32_1 = arith.constant 0 : i32
    return %c0_i32, %c0_i32_0 : i32, i32
  }
  func.func @transform_7(%arg0: i32) -> (i32, i32) {
    %c0_i32 = arith.constant 0 : i32
    %c0_i32_0 = arith.constant 0 : i32
    return %arg0, %c0_i32 : i32, i32
  }
}

</mosaic_0001>

<llo_original>
// kernel: tpu_custom_call.1
$region0: #{tpu_custom_call.1}
  #allocation0 [shape = 'u32[]', space=smem, size = 0x4, offset = 0x4, fixed_abs, tag = 'smem constant byte address 0x4 - core index']
  #allocation1 [shape = 'u32[144,128]{1,0:T(1,128)}', space=vmem, size = 0x12000, scoped, tag = 'internal scratch']
  %s0 = inlined_call_operand.vmem [shape: f32[16,1], index: 0, kind: input, shape index: {}]
  %s1 = inlined_call_operand.vmem [shape: f32[1,128], index: 1, kind: input, shape index: {}]
  %s2 = inlined_call_operand.hbm [shape: bf16[128,128], index: 2, kind: input, shape index: {}]
  %s3 = inlined_call_operand.hbm [shape: bf16[128,128], index: 3, kind: input, shape index: {}]
  %s4 = inlined_call_operand.vmem [shape: f32[1,128], index: 4, kind: input, shape index: {}]
  %s5 = inlined_call_operand.hbm [shape: bf16[128,128], index: 5, kind: input, shape index: {}]
  %s6 = inlined_call_operand.vmem [shape: f32[1,128], index: 6, kind: input, shape index: {}]
  %s7 = inlined_call_operand.hbm [shape: f32[16,128], index: 7, kind: output, shape index: {}]
  %s8 = sld [smem:[#allocation0]]
  $region73: #{tpu_custom_call.1} parent=0
    _
  %s10 = ssub.s32 1, %s8
  %s11 = scalar_select 0, %s10, %s8
  $region1: #{tpu_custom_call.1} parent=0
    #allocation2 [shape = 'u8[32768]{0}', space=vmem, size = 0x8000, scoped, tag = 'input window, operand 2, single buffered']
    #allocation3 [shape = 's32[2]{0}', space=sflag, size = 0x8, scoped, tag = 'scoped memory for tpu_custom_call.1']
    #allocation4 [shape = 's32[2]{0}', space=sflag, size = 0x8, scoped, tag = 'scoped memory for tpu_custom_call.1']
    #allocation5 [shape = 'u8[32768]{0}', space=vmem, size = 0x8000, scoped, tag = 'input window, operand 3, single buffered']
    #allocation6 [shape = 's32[1]{0}', space=sflag, size = 0x4, scoped, tag = 'scoped memory for tpu_custom_call.1']
    #allocation7 [shape = 'u8[32768]{0}', space=vmem, size = 0x8000, scoped, tag = 'input window, operand 5, single buffered']
    #allocation8 [shape = 'u8[8192]{0}', space=vmem, size = 0x2000, scoped, tag = 'output window, operand 0']
    %12 = vsyncpa [#allocation3], 0
    %13 = vsyncpa [#allocation6], 0
    %14 = vsyncpa [#allocation4], 0
    %s15 = scalar_lea.sflag [#allocation4], 1
    %16 = vsyncpa %s15, 0
    loop: start=0, step=1, limit=4
    $region2: #{tpu_custom_call.1} parent=1 // loop_pre_header
      _
    $region3: #{tpu_custom_call.1} parent=1 // loop_header
      %s18 = sphi 0, %s22
      %p19 = scmp.ge.s32.totalorder %s18, 4
      %s28 = sphi 0, %s30
      %s31 = sphi 0, %s28
      %s32 = sphi 0, %s31
      %s48 = sphi 0, %s32
      %s52 = sphi 0, %s52
      %s54 = sphi 0, %s52
      %s55 = sphi 0, %s54
      %s69 = sphi 0, %s55
      %s73 = sphi 0, %s73
      %s75 = sphi 0, %s73
      %s76 = sphi 0, %s75
      %s90 = sphi 0, %s76
      %s94 = sphi 0, %s94
      %s96 = sphi 0, %s94
      %s97 = sphi 0, %s96
      %s111 = sphi 0, %s97
      %s115 = sphi 0, %s115
      %s117 = sphi 0, %s115
      %s118 = sphi 0, %s117
      %s132 = sphi 0, %s118
      %s136 = sphi 0, %s136
      %s138 = sphi 0, %s136
      %s139 = sphi 0, %s138
      %s153 = sphi 0, %s139
      %s157 = sphi 0, %s157
      %s159 = sphi 0, %s157
      %s160 = sphi 0, %s159
      %s174 = sphi 0, %s160
      %s180 = sphi 0, %s182
      %s183 = sphi 0, %s180
      %s184 = sphi 0, %s183
      %s200 = sphi 0, %s184
    $region4: #{tpu_custom_call.1} parent=1 // loop_header_branch
      %21 = sbr.rel (%p19) target = $region8
    $region5: #{tpu_custom_call.1} parent=1 // loop_body
      %s23 = ssub.s32 %s18, 1
      %s24 = ssub.s32 %s18, 2
      %s25 = sadd.s32 %s18, 1
      %s26 = ssub.s32 %s18, %s25
      %p27 = scmp.eq.s32.totalorder %s26, 0
      %s29 = sadd.s32 %s28, 1
      %s30 = scalar_select %p27, %s28, %s29
      %p33 = pneg %p27
      %p34 = scmp.eq.s32.totalorder %s18, 1
      %p35 = por %p33, %p34
      %p36 = scmp.ne.s32.totalorder %s28, %s31
      %p37 = scmp.eq.s32.totalorder %s18, 0
      %p38 = por %p36, %p37
      %p39 = scmp.ne.s32.totalorder %s28, %s31
      %p40 = scmp.eq.s32.totalorder %s23, 1
      %p41 = por %p39, %p40
      %p42 = scmp.ne.s32.totalorder %s31, %s32
      %p43 = scmp.eq.s32.totalorder %s23, 0
      %p44 = por %p42, %p43
      %p45 = scmp.ne.s32.totalorder %s31, %s32
      %p46 = scmp.eq.s32.totalorder %s24, 1
      %p47 = por %p45, %p46
      %p49 = scmp.ne.s32.totalorder %s32, %s48
      %p50 = scmp.eq.s32.totalorder %s24, 0
      %p51 = por %p49, %p50
      %s53 = sadd.s32 %s52, 1
      %p56 = scmp.eq.s32.totalorder %s18, 1
      %p57 = scmp.ne.s32.totalorder %s52, %s54
      %p58 = scmp.eq.s32.totalorder %s18, 0
      %p59 = por %p57, %p58
      %p60 = scmp.ne.s32.totalorder %s52, %s54
      %p61 = scmp.eq.s32.totalorder %s23, 1
      %p62 = por %p60, %p61
      %p63 = scmp.ne.s32.totalorder %s54, %s55
      %p64 = scmp.eq.s32.totalorder %s23, 0
      %p65 = por %p63, %p64
      %p66 = scmp.ne.s32.totalorder %s54, %s55
      %p67 = scmp.eq.s32.totalorder %s24, 1
      %p68 = por %p66, %p67
      %p70 = scmp.ne.s32.totalorder %s55, %s69
      %p71 = scmp.eq.s32.totalorder %s24, 0
      %p72 = por %p70, %p71
      %s74 = sadd.s32 %s73, 1
      %p77 = scmp.eq.s32.totalorder %s18, 1
      %p78 = scmp.ne.s32.totalorder %s73, %s75
      %p79 = scmp.eq.s32.totalorder %s18, 0
      %p80 = por %p78, %p79
      %p81 = scmp.ne.s32.totalorder %s73, %s75
      %p82 = scmp.eq.s32.totalorder %s23, 1
      %p83 = por %p81, %p82
      %p84 = scmp.ne.s32.totalorder %s75, %s76
      %p85 = scmp.eq.s32.totalorder %s23, 0
      %p86 = por %p84, %p85
      %p87 = scmp.ne.s32.totalorder %s75, %s76
      %p88 = scmp.eq.s32.totalorder %s24, 1
      %p89 = por %p87, %p88
      %p91 = scmp.ne.s32.totalorder %s76, %s90
      %p92 = scmp.eq.s32.totalorder %s24, 0
      %p93 = por %p91, %p92
      %s95 = sadd.s32 %s94, 1
      %p98 = scmp.eq.s32.totalorder %s18, 1
      %p99 = scmp.ne.s32.totalorder %s94, %s96
      %p100 = scmp.eq.s32.totalorder %s18, 0
      %p101 = por %p99, %p100
      %p102 = scmp.ne.s32.totalorder %s94, %s96
      %p103 = scmp.eq.s32.totalorder %s23, 1
      %p104 = por %p102, %p103
      %p105 = scmp.ne.s32.totalorder %s96, %s97
      %p106 = scmp.eq.s32.totalorder %s23, 0
      %p107 = por %p105, %p106
      %p108 = scmp.ne.s32.totalorder %s96, %s97
      %p109 = scmp.eq.s32.totalorder %s24, 1
      %p110 = por %p108, %p109
      %p112 = scmp.ne.s32.totalorder %s97, %s111
      %p113 = scmp.eq.s32.totalorder %s24, 0
      %p114 = por %p112, %p113
      %s116 = sadd.s32 %s115, 1
      %p119 = scmp.eq.s32.totalorder %s18, 1
      %p120 = scmp.ne.s32.totalorder %s115, %s117
      %p121 = scmp.eq.s32.totalorder %s18, 0
      %p122 = por %p120, %p121
      %p123 = scmp.ne.s32.totalorder %s115, %s117
      %p124 = scmp.eq.s32.totalorder %s23, 1
      %p125 = por %p123, %p124
      %p126 = scmp.ne.s32.totalorder %s117, %s118
      %p127 = scmp.eq.s32.totalorder %s23, 0
      %p128 = por %p126, %p127
      %p129 = scmp.ne.s32.totalorder %s117, %s118
      %p130 = scmp.eq.s32.totalorder %s24, 1
      %p131 = por %p129, %p130
      %p133 = scmp.ne.s32.totalorder %s118, %s132
      %p134 = scmp.eq.s32.totalorder %s24, 0
      %p135 = por %p133, %p134
      %s137 = sadd.s32 %s136, 1
      %p140 = scmp.eq.s32.totalorder %s18, 1
      %p141 = scmp.ne.s32.totalorder %s136, %s138
      %p142 = scmp.eq.s32.totalorder %s18, 0
      %p143 = por %p141, %p142
      %p144 = scmp.ne.s32.totalorder %s136, %s138
      %p145 = scmp.eq.s32.totalorder %s23, 1
      %p146 = por %p144, %p145
      %p147 = scmp.ne.s32.totalorder %s138, %s139
      %p148 = scmp.eq.s32.totalorder %s23, 0
      %p149 = por %p147, %p148
      %p150 = scmp.ne.s32.totalorder %s138, %s139
      %p151 = scmp.eq.s32.totalorder %s24, 1
      %p152 = por %p150, %p151
      %p154 = scmp.ne.s32.totalorder %s139, %s153
      %p155 = scmp.eq.s32.totalorder %s24, 0
      %p156 = por %p154, %p155
      %s158 = sadd.s32 %s157, 1
      %p161 = scmp.eq.s32.totalorder %s18, 1
      %p162 = scmp.ne.s32.totalorder %s157, %s159
      %p163 = scmp.eq.s32.totalorder %s18, 0
      %p164 = por %p162, %p163
      %p165 = scmp.ne.s32.totalorder %s157, %s159
      %p166 = scmp.eq.s32.totalorder %s23, 1
      %p167 = por %p165, %p166
      %p168 = scmp.ne.s32.totalorder %s159, %s160
      %p169 = scmp.eq.s32.totalorder %s23, 0
      %p170 = por %p168, %p169
      %p171 = scmp.ne.s32.totalorder %s159, %s160
      %p172 = scmp.eq.s32.totalorder %s24, 1
      %p173 = por %p171, %p172
      %p175 = scmp.ne.s32.totalorder %s160, %s174
      %p176 = scmp.eq.s32.totalorder %s24, 0
      %p177 = por %p175, %p176
      %s178 = ssub.s32 %s18, %s25
      %p179 = scmp.eq.s32.totalorder %s178, 0
      %s181 = sadd.s32 %s180, 1
      %s182 = scalar_select %p179, %s180, %s181
      %p185 = pneg %p179
      %p186 = scmp.eq.s32.totalorder %s18, 1
      %p187 = por %p185, %p186
      %p188 = scmp.ne.s32.totalorder %s180, %s183
      %p189 = scmp.eq.s32.totalorder %s18, 0
      %p190 = por %p188, %p189
      %p191 = scmp.ne.s32.totalorder %s180, %s183
      %p192 = scmp.eq.s32.totalorder %s23, 1
      %p193 = por %p191, %p192
      %p194 = scmp.ne.s32.totalorder %s183, %s184
      %p195 = scmp.eq.s32.totalorder %s23, 0
      %p196 = por %p194, %p195
      %p197 = scmp.ne.s32.totalorder %s183, %s184
      %p198 = scmp.eq.s32.totalorder %s24, 1
      %p199 = por %p197, %p198
      %p201 = scmp.ne.s32.totalorder %s184, %s200
      %p202 = scmp.eq.s32.totalorder %s24, 0
      %p203 = por %p201, %p202
      %p204 = scmp.le.s32.totalorder 1, %s18
      %p205 = scmp.lt.s32.totalorder %s18, 3
      %p206 = pnand %p204, %p205
      %p207 = pneg %p206
      // Predicated region
      $region9: #{tpu_custom_call.1} parent=5 // pred_check
        _
      $region10: #{tpu_custom_call.1} parent=5 // pred_check_branch
        %209 = sbr.rel (%p206) target = $region12
      $region11: #{tpu_custom_call.1} parent=5 // pred_region
        %s210 = ssub.s32 %s18, 1
        // Predicated region
        $region13: #{tpu_custom_call.1} parent=11 // pred_check
          %p211 = pneg %p65
        $region14: #{tpu_custom_call.1} parent=11 // pred_check_branch
          %213 = sbr.rel (%p211) target = $region16
        $region15: #{tpu_custom_call.1} parent=11 // pred_region
          _
        $region16: #{tpu_custom_call.1} parent=11 // pred_fallthru
          _
        // Predicated region
        $region17: #{tpu_custom_call.1} parent=11 // pred_check
          %p214 = pneg %p86
        $region18: #{tpu_custom_call.1} parent=11 // pred_check_branch
          %216 = sbr.rel (%p214) target = $region20
        $region19: #{tpu_custom_call.1} parent=11 // pred_region
          %s218 = ssub.s32 1024, 1024
          %219 = vsyncadd [#allocation3], %s218
          %s220 = sshll.u32 [#allocation2], 4
          %s221 = int_to_ptr.vmem [resolvable:$true] %s220
          %226 = dma.hbm_to_vmem [thread:$0]  %s2, 1024, %s221, [#allocation3], 64, 64, 4
        $region20: #{tpu_custom_call.1} parent=11 // pred_fallthru
          _
        // Predicated region
        $region21: #{tpu_custom_call.1} parent=11 // pred_check
          %p227 = pneg %p107
        $region22: #{tpu_custom_call.1} parent=11 // pred_check_branch
          %229 = sbr.rel (%p227) target = $region24
        $region23: #{tpu_custom_call.1} parent=11 // pred_region
          %s231 = ssub.s32 1024, 1024
          %232 = vsyncadd [#allocation6], %s231
          %s233 = sshll.u32 [#allocation5], 4
          %s234 = int_to_ptr.vmem [resolvable:$true] %s233
          %239 = dma.hbm_to_vmem [thread:$0]  %s3, 1024, %s234, [#allocation6], 64, 64, 4
        $region24: #{tpu_custom_call.1} parent=11 // pred_fallthru
          _
        // Predicated region
        $region25: #{tpu_custom_call.1} parent=11 // pred_check
          %p240 = pneg %p128
        $region26: #{tpu_custom_call.1} parent=11 // pred_check_branch
          %242 = sbr.rel (%p240) target = $region28
        $region27: #{tpu_custom_call.1} parent=11 // pred_region
          _
        $region28: #{tpu_custom_call.1} parent=11 // pred_fallthru
          _
        // Predicated region
        $region29: #{tpu_custom_call.1} parent=11 // pred_check
          %p243 = pneg %p149
        $region30: #{tpu_custom_call.1} parent=11 // pred_check_branch
          %245 = sbr.rel (%p243) target = $region32
        $region31: #{tpu_custom_call.1} parent=11 // pred_region
          %s247 = ssub.s32 1024, 1024
          %248 = vsyncadd [#allocation6], %s247
          %s249 = sshll.u32 [#allocation7], 4
          %s250 = int_to_ptr.vmem [resolvable:$true] %s249
          %255 = dma.hbm_to_vmem [thread:$0]  %s5, 1024, %s250, [#allocation6], 64, 64, 4
        $region32: #{tpu_custom_call.1} parent=11 // pred_fallthru
          _
        // Predicated region
        $region33: #{tpu_custom_call.1} parent=11 // pred_check
          %p256 = pneg %p170
        $region34: #{tpu_custom_call.1} parent=11 // pred_check_branch
          %258 = sbr.rel (%p256) target = $region36
        $region35: #{tpu_custom_call.1} parent=11 // pred_region
          _
        $region36: #{tpu_custom_call.1} parent=11 // pred_fallthru
          _
      $region12: #{tpu_custom_call.1} parent=5 // pred_fallthru
        _
      %p259 = scmp.lt.s32.totalorder %s18, 2
      // Predicated region
      $region37: #{tpu_custom_call.1} parent=5 // pred_check
        %p260 = pneg %p259
      $region38: #{tpu_custom_call.1} parent=5 // pred_check_branch
        %262 = sbr.rel (%p260) target = $region40
      $region39: #{tpu_custom_call.1} parent=5 // pred_region
        // Predicated region
        $region41: #{tpu_custom_call.1} parent=39 // pred_check
          %p263 = pneg %p38
        $region42: #{tpu_custom_call.1} parent=39 // pred_check_branch
          %265 = sbr.rel (%p263) target = $region44
        $region43: #{tpu_custom_call.1} parent=39 // pred_region
          %p266 = scmp.lt.s32.totalorder %s18, 1
          %s267 = scalar_select %p266, %s18, 1
          %s268 = smul.addr %s267, 8
          %s269 = scalar_lea.vmem %s0, %s268
        $region44: #{tpu_custom_call.1} parent=39 // pred_fallthru
          _
      $region40: #{tpu_custom_call.1} parent=5 // pred_fallthru
        _
      %p270 = scmp.le.s32.totalorder 1, %s18
      %p271 = scmp.lt.s32.totalorder %s18, 3
      %p272 = pnand %p270, %p271
      %p273 = pneg %p272
      // Predicated region
      $region45: #{tpu_custom_call.1} parent=5 // pred_check
        _
      $region46: #{tpu_custom_call.1} parent=5 // pred_check_branch
        %275 = sbr.rel (%p272) target = $region48
      $region47: #{tpu_custom_call.1} parent=5 // pred_region
        %s276 = ssub.s32 %s18, 1
        // Predicated region
        $region49: #{tpu_custom_call.1} parent=47 // pred_check
          %p277 = pneg %p86
        $region50: #{tpu_custom_call.1} parent=47 // pred_check_branch
          %279 = sbr.rel (%p277) target = $region52
        $region51: #{tpu_custom_call.1} parent=47 // pred_region
          %280 = dma.done [#allocation3], 1024
        $region52: #{tpu_custom_call.1} parent=47 // pred_fallthru
          _
        // Predicated region
        $region53: #{tpu_custom_call.1} parent=47 // pred_check
          %p281 = pneg %p107
        $region54: #{tpu_custom_call.1} parent=47 // pred_check_branch
          %283 = sbr.rel (%p281) target = $region56
        $region55: #{tpu_custom_call.1} parent=47 // pred_region
          %284 = dma.done [#allocation6], 1024
        $region56: #{tpu_custom_call.1} parent=47 // pred_fallthru
          _
        // Predicated region
        $region57: #{tpu_custom_call.1} parent=47 // pred_check
          %p285 = pneg %p149
        $region58: #{tpu_custom_call.1} parent=47 // pred_check_branch
          %287 = sbr.rel (%p285) target = $region60
        $region59: #{tpu_custom_call.1} parent=47 // pred_region
          %288 = dma.done [#allocation6], 1024
        $region60: #{tpu_custom_call.1} parent=47 // pred_fallthru
          _
        %p289 = scmp.lt.s32.totalorder %s23, 1
        %s290 = scalar_select %p289, %s23, 1
        %s291 = smul.addr %s290, 8
        %s292 = scalar_lea.vmem %s0, %s291
        %p293 = pneg %p44
        %p294 = pneg %p41
        %p295 = pneg %p65
        %p296 = pneg %p62
        %p297 = pneg %p86
        %p298 = pneg %p83
        %p299 = pneg %p107
        %p300 = pneg %p104
        %p301 = pneg %p128
        %p302 = pneg %p125
        %p303 = pneg %p149
        %p304 = pneg %p146
        %p305 = pneg %p170
        %p306 = pneg %p167
        %p307 = pneg %p196
        %p308 = pneg %p193
        %s309 = sand.u32 %s183, 1
        %s310 = scalar_lea.sflag [#allocation4], %s309
        %s311 = sand.u32 %s183, 1
        %s312 = smul.addr %s311, 8
        %s313 = scalar_lea.vmem [#allocation8], %s312
        %p314 = scmp.lt.s32.totalorder %s23, 1
        %s315 = scalar_select %p314, %s23, 1
        %s316 = smul.addr %s315, 8
        %s317 = scalar_lea.vmem %s0, %s316
        %v319 = vld [vmem:[%s317] sm:$0xff]
        %v320 = vld [vmem:[%s1] sm:$0x1]
        %322 = vset.pattern.permute.xlu0 0
        %323 = vperm.xlu0 %322, %v319
        %v324 = vpop.permute.xlu0 %323
        %v327 = vlaneseq
        %v328 = vshrl.u32 %v327, 7
        %v329 = vsub.s32 0, %v328
        %v330 = vrot.slane %v320, %v329
        %v332 = vmul.f32 %v324, %v330
        %v333 = vand.u32 2147483647, %v332
        %vm334 = vcmp.le.f32.partialorder %v333, 0.7853982
        %vm335 = vcmp.lt.s32.totalorder %v332, 0
        %v336 = vand.u32 %v332, 2139095040
        %v337 = vshrl.u32 %v336, 23
        %v338 = vsub.s32 %v337, 127
        %v339 = vand.u32 2147483647, %v332
        %v340 = vand.u32 %v339, 8388607
        %v341 = vor.u32 %v340, 8388608
        %v342 = vsub.s32 0, %v341
        %v343 = vadd.s32 %v338, 1
        %vm344 = vcmp.gt.s32.totalorder %v343, 0
        %v345 = vsel %vm344, %v343, 0
        %v346 = vshrl.u32 %v345, 5
        %v347 = vand.u32 %v345, 31
        %v348 = vsub.s32 32, %v347
        %v349 = vshrl.u32 683565275, %v348
        %v350 = vshll.u32 683565275, %v347
        %v351 = vshrl.u32 2475754826, %v348
        %v352 = vor.u32 %v350, %v351
        %v353 = vshll.u32 2475754826, %v347
        %v354 = vshrl.u32 2131351028, %v348
        %v355 = vor.u32 %v353, %v354
        %v356 = vshll.u32 2131351028, %v347
        %v357 = vshrl.u32 2102212464, %v348
        %v358 = vor.u32 %v356, %v357
        %v359 = vshll.u32 2102212464, %v347
        %v360 = vshrl.u32 920167782, %v348
        %v361 = vor.u32 %v359, %v360
        %v362 = vshll.u32 920167782, %v347
        %v363 = vshrl.u32 1326507024, %v348
        %v364 = vor.u32 %v362, %v363
        %vm365 = vcmp.lt.s32.totalorder %v346, 1
        %vm366 = vcmp.lt.s32.totalorder %v346, 2
        %vm367 = vcmp.lt.s32.totalorder %v346, 3
        %vm368 = vcmp.lt.s32.totalorder %v346, 4
        %v369 = vsel %vm365, %v349, %v352
        %v370 = vsel %vm368, %v358, 2102212464
        %v371 = vsel %vm367, %v355, %v370
        %v372 = vsel %vm366, %v369, %v371
        %v373 = vsel %vm365, %v352, %v355
        %v374 = vsel %vm368, %v361, 920167782
        %v375 = vsel %vm367, %v358, %v374
        %v376 = vsel %vm366, %v373, %v375
        %v377 = vsel %vm365, %v355, %v358
        %v378 = vsel %vm368, %v364, 1326507024
        %v379 = vsel %vm367, %v361, %v378
        %v380 = vsel %vm366, %v377, %v379
        %v381 = vshll.u32 %v341, 8
        %v382 = vmul.u32.u64.compose %v381, %v380
        %v383 = vextract.low.u32 %v382
        %v384 = vextract.high.u32 %v382
        %v385 = vmul.u32.u64.compose %v381, %v376
        %v386 = vextract.low.u32 %v385
        %v387 = vextract.high.u32 %v385
        %v388 = vmul.u32 %v381, %v372
        %v389 = vadd.s32 %v384, %v386
        %vm390 = vc.u32 %v384, %v386
        %v391 = vadd.s32 %v387, 1
        %v392 = vsel %vm390, %v391, %v387
        %v393 = vadd.s32 %v388, %v392
        %v394 = vadd.s32 %v393, 536870912
        %v395 = vshrl.u32 %v394, 30
        %v396 = vshll.u32 %v395, 30
        %v397 = vsub.s32 %v393, %v396
        %vm398 = vcmp.lt.s32.totalorder %v397, 0
        %v399 = vsub.s32 0, %v397
        %v400 = vsel %vm398, %v399, %v397
        %v401 = vclz %v400
        %v402 = vsub.s32 %v401, 2
        %vm403 = vcmp.gt.s32.totalorder 0, %v402
        %v404 = vsel %vm403, 0, %v402
        %v405 = vsub.s32 32, %v404
        %v406 = vshll.u32 %v397, %v404
        %v407 = vshrl.u32 %v389, %v405
        %v408 = vor.u32 %v406, %v407
        %v409 = vsub.s32 4294967266, %v404
        %v410 = vadd.s32 %v409, 127
        %v411 = vshll.u32 %v410, 23
        %v412 = vor.u32 4788187, %v411
        %v413 = vand.u32 2147483647, %v412
        %v415 = vcvt.s32.f32 %v408
        %v416 = vmul.f32 %v415, %v413
        %v417 = vxor.u32 %v416, 2147483648
        %v418 = vsel %vm335, %v417, %v416
        %v419 = vsub.s32 4, %v395
        %v420 = vsel %vm335, %v419, %v395
        %v421 = vsel %vm334, %v332, %v418
        %v422 = vsel %vm334, 0, %v420
        %v423 = vcosq.f32.pop %v421
        %v424 = vsinq.f32.pop %v421
        %vm425 = vweird.f32 %v332
        %v426 = vand.u32 %v422, 3
        %vm427 = vcmp.lt.s32.totalorder %v426, 2
        %vm428 = vcmp.eq.s32.totalorder %v426, 0
        %v429 = vxor.u32 %v424, 2147483648
        %v430 = vsel %vm428, %v423, %v429
        %vm431 = vcmp.eq.s32.totalorder %v426, 2
        %v432 = vxor.u32 %v423, 2147483648
        %v433 = vsel %vm431, %v432, %v424
        %v434 = vsel %vm427, %v430, %v433
        %v435 = vsel %vm425, nan, %v434
        %v436 = vand.u32 2147483647, %v332
        %vm437 = vcmp.le.f32.partialorder %v436, 0.7853982
        %vm438 = vcmp.lt.s32.totalorder %v332, 0
        %v439 = vand.u32 %v332, 2139095040
        %v440 = vshrl.u32 %v439, 23
        %v441 = vsub.s32 %v440, 127
        %v442 = vand.u32 2147483647, %v332
        %v443 = vand.u32 %v442, 8388607
        %v444 = vor.u32 %v443, 8388608
        %v445 = vsub.s32 0, %v444
        %v446 = vadd.s32 %v441, 1
        %vm447 = vcmp.gt.s32.totalorder %v446, 0
        %v448 = vsel %vm447, %v446, 0
        %v449 = vshrl.u32 %v448, 5
        %v450 = vand.u32 %v448, 31
        %v451 = vsub.s32 32, %v450
        %v452 = vshrl.u32 683565275, %v451
        %v453 = vshll.u32 683565275, %v450
        %v454 = vshrl.u32 2475754826, %v451
        %v455 = vor.u32 %v453, %v454
        %v456 = vshll.u32 2475754826, %v450
        %v457 = vshrl.u32 2131351028, %v451
        %v458 = vor.u32 %v456, %v457
        %v459 = vshll.u32 2131351028, %v450
        %v460 = vshrl.u32 2102212464, %v451
        %v461 = vor.u32 %v459, %v460
        %v462 = vshll.u32 2102212464, %v450
        %v463 = vshrl.u32 920167782, %v451
        %v464 = vor.u32 %v462, %v463
        %v465 = vshll.u32 920167782, %v450
        %v466 = vshrl.u32 1326507024, %v451
        %v467 = vor.u32 %v465, %v466
        %vm468 = vcmp.lt.s32.totalorder %v449, 1
        %vm469 = vcmp.lt.s32.totalorder %v449, 2
        %vm470 = vcmp.lt.s32.totalorder %v449, 3
        %vm471 = vcmp.lt.s32.totalorder %v449, 4
        %v472 = vsel %vm468, %v452, %v455
        %v473 = vsel %vm471, %v461, 2102212464
        %v474 = vsel %vm470, %v458, %v473
        %v475 = vsel %vm469, %v472, %v474
        %v476 = vsel %vm468, %v455, %v458
        %v477 = vsel %vm471, %v464, 920167782
        %v478 = vsel %vm470, %v461, %v477
        %v479 = vsel %vm469, %v476, %v478
        %v480 = vsel %vm468, %v458, %v461
        %v481 = vsel %vm471, %v467, 1326507024
        %v482 = vsel %vm470, %v464, %v481
        %v483 = vsel %vm469, %v480, %v482
        %v484 = vshll.u32 %v444, 8
        %v485 = vmul.u32.u64.compose %v484, %v483
        %v486 = vextract.low.u32 %v485
        %v487 = vextract.high.u32 %v485
        %v488 = vmul.u32.u64.compose %v484, %v479
        %v489 = vextract.low.u32 %v488
        %v490 = vextract.high.u32 %v488
        %v491 = vmul.u32 %v484, %v475
        %v492 = vadd.s32 %v487, %v489
        %vm493 = vc.u32 %v487, %v489
        %v494 = vadd.s32 %v490, 1
        %v495 = vsel %vm493, %v494, %v490
        %v496 = vadd.s32 %v491, %v495
        %v497 = vadd.s32 %v496, 536870912
        %v498 = vshrl.u32 %v497, 30
        %v499 = vshll.u32 %v498, 30
        %v500 = vsub.s32 %v496, %v499
        %vm501 = vcmp.lt.s32.totalorder %v500, 0
        %v502 = vsub.s32 0, %v500
        %v503 = vsel %vm501, %v502, %v500
        %v504 = vclz %v503
        %v505 = vsub.s32 %v504, 2
        %vm506 = vcmp.gt.s32.totalorder 0, %v505
        %v507 = vsel %vm506, 0, %v505
        %v508 = vsub.s32 32, %v507
        %v509 = vshll.u32 %v500, %v507
        %v510 = vshrl.u32 %v492, %v508
        %v511 = vor.u32 %v509, %v510
        %v512 = vsub.s32 4294967266, %v507
        %v513 = vadd.s32 %v512, 127
        %v514 = vshll.u32 %v513, 23
        %v515 = vor.u32 4788187, %v514
        %v516 = vand.u32 2147483647, %v515
        %v518 = vcvt.s32.f32 %v511
        %v519 = vmul.f32 %v518, %v516
        %v520 = vxor.u32 %v519, 2147483648
        %v521 = vsel %vm438, %v520, %v519
        %v522 = vsub.s32 4, %v498
        %v523 = vsel %vm438, %v522, %v498
        %v524 = vsel %vm437, %v332, %v521
        %v525 = vsel %vm437, 0, %v523
        %v526 = vcosq.f32.pop %v524
        %v527 = vsinq.f32.pop %v524
        %vm528 = vweird.f32 %v332
        %v529 = vadd.s32 %v525, 3
        %v530 = vand.u32 %v529, 3
        %vm531 = vcmp.lt.s32.totalorder %v530, 2
        %vm532 = vcmp.eq.s32.totalorder %v530, 0
        %v533 = vxor.u32 %v527, 2147483648
        %v534 = vsel %vm532, %v526, %v533
        %vm535 = vcmp.eq.s32.totalorder %v530, 2
        %v536 = vxor.u32 %v526, 2147483648
        %v537 = vsel %vm535, %v536, %v527
        %v538 = vsel %vm531, %v534, %v537
        %v539 = vsel %vm528, nan, %v538
        %v540 = vpack.c.bf16 %v435, %v435
        %v541 = vld [vmem:[#allocation2] sm:$0xf]
        %v542 = vld [vmem:[#allocation2 + $0x4] sm:$0xf]
        %v543 = vld [vmem:[#allocation2 + $0x8] sm:$0xf]
        %v544 = vld [vmem:[#allocation2 + $0xc] sm:$0xf]
        %v545 = vld [vmem:[#allocation2 + $0x10] sm:$0xf]
        %v546 = vld [vmem:[#allocation2 + $0x14] sm:$0xf]
        %v547 = vld [vmem:[#allocation2 + $0x18] sm:$0xf]
        %v548 = vld [vmem:[#allocation2 + $0x1c] sm:$0xf]
        %v549 = vld [vmem:[#allocation2 + $0x20] sm:$0xf]
        %v550 = vld [vmem:[#allocation2 + $0x24] sm:$0xf]
        %v551 = vld [vmem:[#allocation2 + $0x28] sm:$0xf]
        %v552 = vld [vmem:[#allocation2 + $0x2c] sm:$0xf]
        %v553 = vld [vmem:[#allocation2 + $0x30] sm:$0xf]
        %v554 = vld [vmem:[#allocation2 + $0x34] sm:$0xf]
        %v555 = vld [vmem:[#allocation2 + $0x38] sm:$0xf]
        %v556 = vld [vmem:[#allocation2 + $0x3c] sm:$0xf]
        %v557 = vpack.c.bf16 %v539, %v539
        %v558 = vld [vmem:[#allocation5] sm:$0xf]
        %v559 = vld [vmem:[#allocation5 + $0x4] sm:$0xf]
        %v560 = vld [vmem:[#allocation5 + $0x8] sm:$0xf]
        %v561 = vld [vmem:[#allocation5 + $0xc] sm:$0xf]
        %v562 = vld [vmem:[#allocation5 + $0x10] sm:$0xf]
        %v563 = vld [vmem:[#allocation5 + $0x14] sm:$0xf]
        %v564 = vld [vmem:[#allocation5 + $0x18] sm:$0xf]
        %v565 = vld [vmem:[#allocation5 + $0x1c] sm:$0xf]
        %v566 = vld [vmem:[#allocation5 + $0x20] sm:$0xf]
        %v567 = vld [vmem:[#allocation5 + $0x24] sm:$0xf]
        %v568 = vld [vmem:[#allocation5 + $0x28] sm:$0xf]
        %v569 = vld [vmem:[#allocation5 + $0x2c] sm:$0xf]
        %v570 = vld [vmem:[#allocation5 + $0x30] sm:$0xf]
        %v571 = vld [vmem:[#allocation5 + $0x34] sm:$0xf]
        %v572 = vld [vmem:[#allocation5 + $0x38] sm:$0xf]
        %v573 = vld [vmem:[#allocation5 + $0x3c] sm:$0xf]
        %v590 = vunpack.c.l.b16 %v558
        %v591 = vunpack.c.l.b16 %v559
        %v592 = vunpack.c.l.b16 %v560
        %v593 = vunpack.c.l.b16 %v561
        %v594 = vunpack.c.l.b16 %v562
        %v595 = vunpack.c.l.b16 %v563
        %v596 = vunpack.c.l.b16 %v564
        %v597 = vunpack.c.l.b16 %v565
        %v598 = vunpack.c.l.b16 %v566
        %v599 = vunpack.c.l.b16 %v567
        %v600 = vunpack.c.l.b16 %v568
        %v601 = vunpack.c.l.b16 %v569
        %v602 = vunpack.c.l.b16 %v570
        %v603 = vunpack.c.l.b16 %v571
        %v604 = vunpack.c.l.b16 %v572
        %v605 = vunpack.c.l.b16 %v573
        %v606 = vpack.c.b16 %v591, %v590
        %v607 = vpack.c.b16 %v593, %v592
        %v608 = vpack.c.b16 %v595, %v594
        %v609 = vpack.c.b16 %v597, %v596
        %v610 = vpack.c.b16 %v599, %v598
        %v611 = vpack.c.b16 %v601, %v600
        %v612 = vpack.c.b16 %v603, %v602
        %v613 = vpack.c.b16 %v605, %v604
        %622 = vmatprep.subr.bf16.mxu0 0
        %623 = vmatpush1.bf16.msra.mxu0 %v606
        %624 = vmatprep.subr.bf16.mxu0 0
        %625 = vmatpush1.bf16.msra.mxu0 %v607
        %626 = vmatprep.subr.bf16.mxu0 0
        %627 = vmatpush1.bf16.msra.mxu0 %v608
        %628 = vmatprep.subr.bf16.mxu0 0
        %629 = vmatpush1.bf16.msra.mxu0 %v609
        %630 = vmatprep.subr.bf16.mxu0 0
        %631 = vmatpush1.bf16.msra.mxu0 %v610
        %632 = vmatprep.subr.bf16.mxu0 0
        %633 = vmatpush1.bf16.msra.mxu0 %v611
        %634 = vmatprep.subr.bf16.mxu0 0
        %635 = vmatpush1.bf16.msra.mxu0 %v612
        %636 = vmatprep.subr.bf16.mxu0 0
        %637 = vmatpush1.bf16.msra.mxu0 %v613
        %638 = vmatprep.subr.bf16.mxu0 0
        %639 = vmatpush1.bf16.msra.mxu0 0
        %640 = vmatprep.subr.bf16.mxu0 0
        %641 = vmatpush1.bf16.msra.mxu0 0
        %642 = vmatprep.subr.bf16.mxu0 0
        %643 = vmatpush1.bf16.msra.mxu0 0
        %644 = vmatprep.subr.bf16.mxu0 0
        %645 = vmatpush1.bf16.msra.mxu0 0
        %646 = vmatprep.subr.bf16.mxu0 0
        %647 = vmatpush1.bf16.msra.mxu0 0
        %648 = vmatprep.subr.bf16.mxu0 0
        %649 = vmatpush1.bf16.msra.mxu0 0
        %650 = vmatprep.subr.bf16.mxu0 0
        %651 = vmatpush1.bf16.msra.mxu0 0
        %652 = vmatprep.subr.bf16.mxu0 0
        %653 = vmatpush1.bf16.msra.mxu0 0
        %654 = vmatprep.mubr.bf16.mxu0 0
        %655 = vmatmul.mubr.bf16.gmra.mrb[0].mxu0 %v557
        %v656 = vpop.f32.mrb[0].mxu0
        %v657 = vadd.f32 0.0, %v656
        %v658 = vpop.f32.mrb[0].mxu0
        %v659 = vpop.f32.mrb[0].mxu0
        %v660 = vpop.f32.mrb[0].mxu0
        %661 = vdwg.mxu0
        %v678 = vunpack.c.l.b16 %v541
        %v679 = vunpack.c.l.b16 %v542
        %v680 = vunpack.c.l.b16 %v543
        %v681 = vunpack.c.l.b16 %v544
        %v682 = vunpack.c.l.b16 %v545
        %v683 = vunpack.c.l.b16 %v546
        %v684 = vunpack.c.l.b16 %v547
        %v685 = vunpack.c.l.b16 %v548
        %v686 = vunpack.c.l.b16 %v549
        %v687 = vunpack.c.l.b16 %v550
        %v688 = vunpack.c.l.b16 %v551
        %v689 = vunpack.c.l.b16 %v552
        %v690 = vunpack.c.l.b16 %v553
        %v691 = vunpack.c.l.b16 %v554
        %v692 = vunpack.c.l.b16 %v555
        %v693 = vunpack.c.l.b16 %v556
        %v694 = vpack.c.b16 %v679, %v678
        %v695 = vpack.c.b16 %v681, %v680
        %v696 = vpack.c.b16 %v683, %v682
        %v697 = vpack.c.b16 %v685, %v684
        %v698 = vpack.c.b16 %v687, %v686
        %v699 = vpack.c.b16 %v689, %v688
        %v700 = vpack.c.b16 %v691, %v690
        %v701 = vpack.c.b16 %v693, %v692
        %710 = vmatprep.subr.bf16.mxu0 0
        %711 = vmatpush1.bf16.msra.mxu0 %v694
        %712 = vmatprep.subr.bf16.mxu0 0
        %713 = vmatpush1.bf16.msra.mxu0 %v695
        %714 = vmatprep.subr.bf16.mxu0 0
        %715 = vmatpush1.bf16.msra.mxu0 %v696
        %716 = vmatprep.subr.bf16.mxu0 0
        %717 = vmatpush1.bf16.msra.mxu0 %v697
        %718 = vmatprep.subr.bf16.mxu0 0
        %719 = vmatpush1.bf16.msra.mxu0 %v698
        %720 = vmatprep.subr.bf16.mxu0 0
        %721 = vmatpush1.bf16.msra.mxu0 %v699
        %722 = vmatprep.subr.bf16.mxu0 0
        %723 = vmatpush1.bf16.msra.mxu0 %v700
        %724 = vmatprep.subr.bf16.mxu0 0
        %725 = vmatpush1.bf16.msra.mxu0 %v701
        %726 = vmatprep.subr.bf16.mxu0 0
        %727 = vmatpush1.bf16.msra.mxu0 0
        %728 = vmatprep.subr.bf16.mxu0 0
        %729 = vmatpush1.bf16.msra.mxu0 0
        %730 = vmatprep.subr.bf16.mxu0 0
        %731 = vmatpush1.bf16.msra.mxu0 0
        %732 = vmatprep.subr.bf16.mxu0 0
        %733 = vmatpush1.bf16.msra.mxu0 0
        %734 = vmatprep.subr.bf16.mxu0 0
        %735 = vmatpush1.bf16.msra.mxu0 0
        %736 = vmatprep.subr.bf16.mxu0 0
        %737 = vmatpush1.bf16.msra.mxu0 0
        %738 = vmatprep.subr.bf16.mxu0 0
        %739 = vmatpush1.bf16.msra.mxu0 0
        %740 = vmatprep.subr.bf16.mxu0 0
        %741 = vmatpush1.bf16.msra.mxu0 0
        %742 = vmatprep.mubr.bf16.mxu0 0
        %743 = vmatmul.mubr.bf16.gmra.mrb[0].mxu0 %v540
        %v744 = vpop.f32.mrb[0].mxu0
        %v745 = vadd.f32 %v657, %v744
        %v746 = vpop.f32.mrb[0].mxu0
        %v747 = vpop.f32.mrb[0].mxu0
        %v748 = vpop.f32.mrb[0].mxu0
        %749 = vdwg.mxu0
        %v750 = vld [vmem:[%s4] sm:$0x1]
        %v752 = vlaneseq
        %v753 = vshrl.u32 %v752, 7
        %v754 = vsub.s32 0, %v753
        %v755 = vrot.slane %v750, %v754
        %v757 = vadd.f32 %v745, %v755
        %v758 = vsub.f32 0.0, %v757
        %v759 = vmul.f32 %v758, 1.442695
        %v760 = vpow.pop %v759
        %v761 = vadd.f32 %v760, 1.0
        %v762 = vrcp.pop %v761
        %v763 = vmul.f32 1.0, %v762
        %v764 = vmul.f32 %v757, %v763
        %v765 = vpack.c.bf16 %v764, %v764
        %v766 = vld [vmem:[#allocation7] sm:$0xf]
        %v767 = vld [vmem:[#allocation7 + $0x4] sm:$0xf]
        %v768 = vld [vmem:[#allocation7 + $0x8] sm:$0xf]
        %v769 = vld [vmem:[#allocation7 + $0xc] sm:$0xf]
        %v770 = vld [vmem:[#allocation7 + $0x10] sm:$0xf]
        %v771 = vld [vmem:[#allocation7 + $0x14] sm:$0xf]
        %v772 = vld [vmem:[#allocation7 + $0x18] sm:$0xf]
        %v773 = vld [vmem:[#allocation7 + $0x1c] sm:$0xf]
        %v774 = vld [vmem:[#allocation7 + $0x20] sm:$0xf]
        %v775 = vld [vmem:[#allocation7 + $0x24] sm:$0xf]
        %v776 = vld [vmem:[#allocation7 + $0x28] sm:$0xf]
        %v777 = vld [vmem:[#allocation7 + $0x2c] sm:$0xf]
        %v778 = vld [vmem:[#allocation7 + $0x30] sm:$0xf]
        %v779 = vld [vmem:[#allocation7 + $0x34] sm:$0xf]
        %v780 = vld [vmem:[#allocation7 + $0x38] sm:$0xf]
        %v781 = vld [vmem:[#allocation7 + $0x3c] sm:$0xf]
        %v782 = vld [vmem:[%s6] sm:$0x1]
        %v784 = vlaneseq
        %v785 = vshrl.u32 %v784, 7
        %v786 = vsub.s32 0, %v785
        %v787 = vrot.slane %v782, %v786
        %v805 = vunpack.c.l.b16 %v766
        %v806 = vunpack.c.l.b16 %v767
        %v807 = vunpack.c.l.b16 %v768
        %v808 = vunpack.c.l.b16 %v769
        %v809 = vunpack.c.l.b16 %v770
        %v810 = vunpack.c.l.b16 %v771
        %v811 = vunpack.c.l.b16 %v772
        %v812 = vunpack.c.l.b16 %v773
        %v813 = vunpack.c.l.b16 %v774
        %v814 = vunpack.c.l.b16 %v775
        %v815 = vunpack.c.l.b16 %v776
        %v816 = vunpack.c.l.b16 %v777
        %v817 = vunpack.c.l.b16 %v778
        %v818 = vunpack.c.l.b16 %v779
        %v819 = vunpack.c.l.b16 %v780
        %v820 = vunpack.c.l.b16 %v781
        %v821 = vpack.c.b16 %v806, %v805
        %v822 = vpack.c.b16 %v808, %v807
        %v823 = vpack.c.b16 %v810, %v809
        %v824 = vpack.c.b16 %v812, %v811
        %v825 = vpack.c.b16 %v814, %v813
        %v826 = vpack.c.b16 %v816, %v815
        %v827 = vpack.c.b16 %v818, %v817
        %v828 = vpack.c.b16 %v820, %v819
        %837 = vmatprep.subr.bf16.mxu0 0
        %838 = vmatpush1.bf16.msra.mxu0 %v821
        %839 = vmatprep.subr.bf16.mxu0 0
        %840 = vmatpush1.bf16.msra.mxu0 %v822
        %841 = vmatprep.subr.bf16.mxu0 0
        %842 = vmatpush1.bf16.msra.mxu0 %v823
        %843 = vmatprep.subr.bf16.mxu0 0
        %844 = vmatpush1.bf16.msra.mxu0 %v824
        %845 = vmatprep.subr.bf16.mxu0 0
        %846 = vmatpush1.bf16.msra.mxu0 %v825
        %847 = vmatprep.subr.bf16.mxu0 0
        %848 = vmatpush1.bf16.msra.mxu0 %v826
        %849 = vmatprep.subr.bf16.mxu0 0
        %850 = vmatpush1.bf16.msra.mxu0 %v827
        %851 = vmatprep.subr.bf16.mxu0 0
        %852 = vmatpush1.bf16.msra.mxu0 %v828
        %853 = vmatprep.subr.bf16.mxu0 0
        %854 = vmatpush1.bf16.msra.mxu0 0
        %855 = vmatprep.subr.bf16.mxu0 0
        %856 = vmatpush1.bf16.msra.mxu0 0
        %857 = vmatprep.subr.bf16.mxu0 0
        %858 = vmatpush1.bf16.msra.mxu0 0
        %859 = vmatprep.subr.bf16.mxu0 0
        %860 = vmatpush1.bf16.msra.mxu0 0
        %861 = vmatprep.subr.bf16.mxu0 0
        %862 = vmatpush1.bf16.msra.mxu0 0
        %863 = vmatprep.subr.bf16.mxu0 0
        %864 = vmatpush1.bf16.msra.mxu0 0
        %865 = vmatprep.subr.bf16.mxu0 0
        %866 = vmatpush1.bf16.msra.mxu0 0
        %867 = vmatprep.subr.bf16.mxu0 0
        %868 = vmatpush1.bf16.msra.mxu0 0
        %869 = vmatprep.mubr.bf16.mxu0 0
        %870 = vmatmul.mubr.bf16.gmra.mrb[0].mxu0 %v765
        %v871 = vpop.f32.mrb[0].mxu0
        %v872 = vadd.f32 %v787, %v871
        %v873 = vpop.f32.mrb[0].mxu0
        %v874 = vpop.f32.mrb[0].mxu0
        %v875 = vpop.f32.mrb[0].mxu0
        %876 = vdwg.mxu0
        %877 = vst [vmem:[%s313] sm:$0xff] %v872
        %s878 = sand.u32 %s183, 1
        %s879 = scalar_lea.sflag [#allocation4], %s878
        %s880 = sand.u32 %s183, 1
        %s881 = smul.addr %s880, 8
        %s882 = scalar_lea.vmem [#allocation8], %s881
        // Predicated region
        $region61: #{tpu_custom_call.1} parent=47 // pred_check
          %p883 = pneg %p193
        $region62: #{tpu_custom_call.1} parent=47 // pred_check_branch
          %885 = sbr.rel (%p883) target = $region64
        $region63: #{tpu_custom_call.1} parent=47 // pred_region
          %s887 = ssub.s32 128, 128
          %888 = vsyncadd %s879, %s887
          %s889 = smul.addr %s23, 128
          %s890 = scalar_lea.hbm %s7, %s889
          %s892 = sshll.u32 %s882, 4
          %s893 = int_to_ptr.vmem [resolvable:$true] %s892
          %895 = dma.vmem_to_hbm [thread:$0]  %s893, 128, %s890, %s879
        $region64: #{tpu_custom_call.1} parent=47 // pred_fallthru
          _
      $region48: #{tpu_custom_call.1} parent=5 // pred_fallthru
        _
      %p896 = scmp.le.s32.totalorder 2, %s18
      // Predicated region
      $region65: #{tpu_custom_call.1} parent=5 // pred_check
        %p897 = pneg %p896
      $region66: #{tpu_custom_call.1} parent=5 // pred_check_branch
        %899 = sbr.rel (%p897) target = $region68
      $region67: #{tpu_custom_call.1} parent=5 // pred_region
        %s900 = ssub.s32 %s18, 2
        // Predicated region
        $region69: #{tpu_custom_call.1} parent=67 // pred_check
          %p901 = pneg %p199
        $region70: #{tpu_custom_call.1} parent=67 // pred_check_branch
          %903 = sbr.rel (%p901) target = $region72
        $region71: #{tpu_custom_call.1} parent=67 // pred_region
          %s904 = sand.u32 %s184, 1
          %s905 = scalar_lea.sflag [#allocation4], %s904
          %s906 = sand.u32 %s184, 1
          %s907 = smul.addr %s906, 8
          %s908 = scalar_lea.vmem [#allocation8], %s907
          %909 = dma.done %s905, 128
        $region72: #{tpu_custom_call.1} parent=67 // pred_fallthru
          _
      $region68: #{tpu_custom_call.1} parent=5 // pred_fallthru
        _
    $region6: #{tpu_custom_call.1} parent=1 // loop_footer
      %s22 = sadd.s32 1, %s18
    $region7: #{tpu_custom_call.1} parent=1 // loop_footer_branch
      %17 = sbr.rel target = $region3
    $region8: #{tpu_custom_call.1} parent=1 // loop_exit
      _
    %910 = vsyncpa [#allocation3], 1
    %s911 = scalar_lea.sflag [#allocation3], 1
    %912 = vsyncpa %s911, 1
    %913 = vsyncpa [#allocation6], 1
    %914 = vsyncpa [#allocation4], 1
    %s915 = scalar_lea.sflag [#allocation4], 1
    %916 = vsyncpa %s915, 1

</llo_original>
